<compile_context>
chip_gen: v5e
topology: v5e:2x2
jax: 0.10.0
libtpu: 0.0.40
codegen_flags: <defaults>
</compile_context>

<pallas_src>
import functools

import jax
import jax.numpy as jnp
from jax.experimental import pallas as pl
from jax.experimental.pallas import tpu as pltpu

_LANE = 128


def _round_up(x, m):
    return (x + m - 1) // m * m


def _gap_kernel(x_ref, o_ref, acc_ref, *, inv_hw, hw_total, hw_chunk, mask_hw_tail):
    # x_ref:   (nb, cb, hw_chunk)  -- H*W flattened onto lanes (dense DMA)
    # o_ref:   (nb, cb)            -- lane-dense output (C on lanes)
    # acc_ref: (nb, cb) f32 scratch accumulator, carried across the HW axis
    k = pl.program_id(2)

    @pl.when(k == 0)
    def _():
        acc_ref[...] = jnp.zeros_like(acc_ref)

    x = x_ref[...]
    if mask_hw_tail:
        # Zero out padded lanes of the final (partial) HW chunk.
        lane = jax.lax.broadcasted_iota(jnp.int32, x.shape, dimension=2)
        x = jnp.where(lane < (hw_total - k * hw_chunk), x, jnp.zeros_like(x))

    # Accumulate in f32 without materializing a full-tile upcast.
    acc_ref[...] += jnp.sum(x, axis=-1, dtype=jnp.float32)

    @pl.when(k == pl.num_programs(2) - 1)
    def _():
        o_ref[...] = (acc_ref[...] * inv_hw).astype(o_ref.dtype)


def _vmem_capacity_bytes():
    try:
        cap = getattr(pltpu.get_tpu_info(), "vmem_capacity_bytes", None)
        if cap:
            return int(cap)
    except Exception:
        pass
    return 64 * 1024 * 1024  # conservative (v7x-sized) fallback


def _choose_tiles(N, C, HW, itemsize, budget_bytes):
    """Pick (nb, cb, hw_chunk) with padding-aware VMEM accounting.

    Legality (last two dims of each block must be /8, /128 or the full dim):
      * input block (nb, cb, hw_chunk): cb % 8 == 0 or cb == C;
                                        hw_chunk % 128 == 0 or hw_chunk == HW
      * output block (nb, cb):          nb % 8 == 0 or nb == N;
                                        cb % 128 == 0 or cb == C
    """
    pack = max(8, 32 // itemsize)  # sublane pack: 8 f32 / 16 bf16 / 32 int8

    def in_bytes(nb, cb, hw_c):
        return nb * _round_up(cb, pack) * _round_up(hw_c, _LANE) * itemsize

    nb_unit = N if N < 8 else 8            # smallest legal row block
    cb_unit = C if C <= _LANE else _LANE   # smallest channel block we'd use
    # Minimum DMA row length when chunking HW: >= ~1 KiB rows, >= 128 lanes.
    hw_floor = min(_round_up(HW, _LANE),
                   _round_up(max(_LANE, 1024 // itemsize), _LANE))

    # 1) hw_chunk: whole spatial extent if a minimal block fits; otherwise a
    #    multiple of 128 (masked tail), never below the DMA-row floor.
    if in_bytes(nb_unit, cb_unit, HW) <= budget_bytes:
        hw_chunk = HW
    else:
        max_hw = budget_bytes // (nb_unit * _round_up(cb_unit, pack) * itemsize)
        hw_chunk = max(hw_floor, (max_hw // _LANE) * _LANE)
        if hw_chunk >= HW:
            hw_chunk = HW

    # 2) cb: the whole channel dim if it fits; otherwise the largest multiple
    #    of 128 that fits (preferring a divisor of C -> no padded tail block).
    if C <= _LANE or in_bytes(nb_unit, C, hw_chunk) <= budget_bytes:
        cb = C
    else:
        max_cb = budget_bytes // (nb_unit * _round_up(hw_chunk, _LANE) * itemsize)
        max_cb = max(_LANE, (max_cb // _LANE) * _LANE)
        max_cb = min(max_cb, max(_LANE, (C // _LANE) * _LANE))
        divs = [d for d in range(_LANE, max_cb + 1, _LANE) if C % d == 0]
        cb = max(divs) if divs else max_cb

    # 3) nb: largest row block fitting the padded budget; multiple of 8 or
    #    == N; prefer divisors of N so no padded-tail row block is DMA'd.
    row_bytes = in_bytes(1, cb, hw_chunk)
    max_nb = max(1, budget_bytes // row_bytes)
    if max_nb >= N:
        nb = N
    elif N <= 8:
        nb = N  # nb < 8 and != N is illegal; footprint covered by vmem_limit
    else:
        cap = max(8, (max_nb // 8) * 8)
        nb = cap
        for cand in range(cap, 7, -8):
            if N % cand == 0:
                nb = cand
                break

    # 4) v7x has 2 TensorCores: expose >= 2 parallel blocks when legally
    #    possible (negligible cost on single-TC v5e/v6e at these tile sizes).
    n_c_blocks = pl.cdiv(C, cb)
    if n_c_blocks == 1 and nb == N and N > 8:
        cap = ((N - 1) // 8) * 8
        nb = cap
        for cand in range(cap, 7, -8):
            if N % cand == 0:
                nb = cand
                break

    return nb, cb, hw_chunk, pack


def global_avg_pool2d(x, *, vmem_budget_bytes=None):
    """x: (N, C, H, W) -> (N, C), mean over spatial dims (== F.avg_pool2d with
    kernel_size=(H, W) followed by .view(-1, C))."""
    N, C, H, W = x.shape
    HW = H * W
    itemsize = jnp.dtype(x.dtype).itemsize

    vmem_cap = _vmem_capacity_bytes()
    if vmem_budget_bytes is None:
        # Per-input-buffer budget (pipeline double-buffers it): generous on
        # 128-MiB-VMEM chips (v5e/v6e), tighter on v7x (64 MiB physical).
        vmem_budget_bytes = (8 * 1024 * 1024
                             if vmem_cap >= 128 * 1024 * 1024
                             else 4 * 1024 * 1024)

    nb, cb, hw_chunk, pack = _choose_tiles(N, C, HW, itemsize, vmem_budget_bytes)

    grid = (pl.cdiv(N, nb), pl.cdiv(C, cb), pl.cdiv(HW, hw_chunk))
    mask_hw_tail = (HW % hw_chunk) != 0

    # Flatten spatial dims so H*W is contiguous on the lane axis.
    x2 = x.reshape(N, C, HW)

    kernel = functools.partial(
        _gap_kernel,
        inv_hw=1.0 / float(HW),
        hw_total=HW,
        hw_chunk=hw_chunk,
        mask_hw_tail=mask_hw_tail,
    )

    # Explicit VMEM limit from the real (padded, double-buffered) footprint.
    in_bytes = 2 * nb * _round_up(cb, pack) * _round_up(hw_chunk, _LANE) * itemsize
    out_bytes = 2 * _round_up(nb, pack) * _round_up(cb, _LANE) * itemsize
    acc_bytes = _round_up(nb, 8) * _round_up(cb, _LANE) * 4
    total_bytes = in_bytes + out_bytes + acc_bytes
    vmem_limit = int(min(vmem_cap * 3 // 4,
                         max(total_bytes + (4 << 20), 24 << 20)))

    cost = pl.CostEstimate(
        flops=N * C * HW,
        transcendentals=0,
        bytes_accessed=N * C * HW * itemsize + N * C * itemsize,
    )

    out = pl.pallas_call(
        kernel,
        out_shape=jax.ShapeDtypeStruct((N, C), x.dtype),
        grid_spec=pltpu.PrefetchScalarGridSpec(
            num_scalar_prefetch=0,
            grid=grid,
            in_specs=[
                pl.BlockSpec((nb, cb, hw_chunk), lambda i, j, k: (i, j, k)),
            ],
            out_specs=pl.BlockSpec((nb, cb), lambda i, j, k: (i, j)),
            scratch_shapes=[pltpu.VMEM((nb, cb), jnp.float32)],
        ),
        compiler_params=pltpu.CompilerParams(
            dimension_semantics=("parallel", "parallel", "arbitrary"),
            vmem_limit_bytes=vmem_limit,
        ),
        cost_estimate=cost,
    )(x2)
    return out


if __name__ == "__main__":
    key = jax.random.PRNGKey(0)
    N, C, H, W = 2, 4, 16, 16
    x = jax.random.normal(key, (N, C, H, W), dtype=jnp.float32)

    y = global_avg_pool2d(x)
    jax.block_until_ready(y)

    # Reference check (plain JAX): mean over H, W -> (N, C)
    y_ref = jnp.mean(x, axis=(2, 3))
    assert y.shape == (N, C), y.shape
    assert jnp.allclose(y, y_ref, atol=1e-5, rtol=1e-5)

    print("KERNEL_OK")
</pallas_src>

<mosaic_0001>
module attributes {stable_mosaic.version = 11 : i64} {
  func.func @_gap_kernel(%arg0: i32, %arg1: i32, %arg2: i32, %arg3: memref<2x4x256xf32, #tpu.memory_space<vmem>>, %arg4: memref<2x4xf32, #tpu.memory_space<vmem>>, %arg5: memref<2x4xf32, #tpu.memory_space<vmem>>) attributes {dimension_semantics = [#tpu.dimension_semantics<parallel>, #tpu.dimension_semantics<parallel>, #tpu.dimension_semantics<arbitrary>], iteration_bounds = array<i64: 1, 1, 1>, scalar_prefetch = 0 : i64, scratch_operands = 1 : i64, tpu.core_type = #tpu.core_type<tc>, window_params = [{transform_indices = @transform_0, window_bounds = array<i64: 2, 4, 256>}, {transform_indices = @transform_1, window_bounds = array<i64: 2, 4>}]} {
    %c0_i32 = arith.constant 0 : i32
    %0 = arith.cmpi eq, %arg2, %c0_i32 : i32
    %1 = arith.extui %0 : i1 to i32
    %c0_i32_0 = arith.constant 0 : i32
    %2 = arith.cmpi ne, %1, %c0_i32_0 : i32
    scf.if %2 {
      %cst_9 = arith.constant 0.000000e+00 : f32
      %11 = vector.broadcast %cst_9 : f32 to vector<2x4xf32>
      %c0_10 = arith.constant 0 : index
      %c0_11 = arith.constant 0 : index
      %12 = vector.load %arg5[%c0_10, %c0_11] : memref<2x4xf32, #tpu.memory_space<vmem>>, vector<2x4xf32>
      tpu.vector_store %arg5[%c0_10, %c0_11], %11 {strides = array<i32>} : memref<2x4xf32, #tpu.memory_space<vmem>>, vector<2x4xf32>,
    } else {
    }
    %c0 = arith.constant 0 : index
    %c0_1 = arith.constant 0 : index
    %c0_2 = arith.constant 0 : index
    %3 = vector.load %arg3[%c0, %c0_1, %c0_2] : memref<2x4x256xf32, #tpu.memory_space<vmem>>, vector<2x4x256xf32>
    %c0_3 = arith.constant 0 : index
    %c0_4 = arith.constant 0 : index
    %4 = vector.load %arg5[%c0_3, %c0_4] : memref<2x4xf32, #tpu.memory_space<vmem>>, vector<2x4xf32>
    %cst = arith.constant dense<0.000000e+00> : vector<2x4xf32>
    %5 = vector.multi_reduction <add>, %3, %cst [2] : vector<2x4x256xf32> to vector<2x4xf32>
    %6 = arith.addf %4, %5 : vector<2x4xf32>
    %c0_5 = arith.constant 0 : index
    %c0_6 = arith.constant 0 : index
    %7 = vector.load %arg5[%c0_5, %c0_6] : memref<2x4xf32, #tpu.memory_space<vmem>>, vector<2x4xf32>
    tpu.vector_store %arg5[%c0_5, %c0_6], %6 {strides = array<i32>} : memref<2x4xf32, #tpu.memory_space<vmem>>, vector<2x4xf32>,
    %c0_i32_7 = arith.constant 0 : i32
    %8 = arith.cmpi eq, %arg2, %c0_i32_7 : i32
    %9 = arith.extui %8 : i1 to i32
    %c0_i32_8 = arith.constant 0 : i32
    %10 = arith.cmpi ne, %9, %c0_i32_8 : i32
    scf.if %10 {
      %c0_9 = arith.constant 0 : index
      %c0_10 = arith.constant 0 : index
      %11 = vector.load %arg5[%c0_9, %c0_10] : memref<2x4xf32, #tpu.memory_space<vmem>>, vector<2x4xf32>
      %cst_11 = arith.constant 3.906250e-03 : f32
      %12 = vector.broadcast %cst_11 : f32 to vector<2x4xf32>
      %13 = arith.mulf %11, %12 : vector<2x4xf32>
      %c0_12 = arith.constant 0 : index
      %c0_13 = arith.constant 0 : index
      %14 = vector.load %arg4[%c0_12, %c0_13] : memref<2x4xf32, #tpu.memory_space<vmem>>, vector<2x4xf32>
      tpu.vector_store %arg4[%c0_12, %c0_13], %13 {strides = array<i32>} : memref<2x4xf32, #tpu.memory_space<vmem>>, vector<2x4xf32>,
    } else {
    }
    return
  }
  func.func @transform_0(%arg0: i32, %arg1: i32, %arg2: i32) -> (i32, i32, i32) {
    %c0_i32 = arith.constant 0 : i32
    return %arg0, %arg1, %arg2 : i32, i32, i32
  }
  func.func @transform_1(%arg0: i32, %arg1: i32, %arg2: i32) -> (i32, i32) {
    %c0_i32 = arith.constant 0 : i32
    return %arg0, %arg1 : i32, i32
  }
}

</mosaic_0001>

<llo_original>
// kernel: tpu_custom_call.1
$region0: #{tpu_custom_call.1}
  #allocation0 [shape = 'u32[]', space=smem, size = 0x4, offset = 0x4, fixed_abs, tag = 'smem constant byte address 0x4 - core index']
  #allocation1 [shape = 'u32[72,128]{1,0:T(1,128)}', space=vmem, size = 0x9000, scoped, tag = 'internal scratch']
  #allocation2 [shape = 'f32[2,4]{1,0:T(2,128)}', space=vmem, size = 0x400, scoped, tag = 'scratch operand']
  %s0 = inlined_call_operand.hbm [shape: f32[2,4,256], index: 0, kind: input, shape index: {}]
  %s1 = inlined_call_operand.hbm [shape: f32[2,4], index: 1, kind: output, shape index: {}]
  %s2 = sld [smem:[#allocation0]]
  $region26: #{tpu_custom_call.1} parent=0
    _
  %s4 = ssub.s32 1, %s2
  %s5 = scalar_select 0, %s4, %s2
  $region1: #{tpu_custom_call.1} parent=0
    #allocation3 [shape = 'u8[8192]{0}', space=vmem, size = 0x2000, scoped, tag = 'input window, operand 0, single buffered']
    #allocation4 [shape = 's32[1]{0}', space=sflag, size = 0x4, scoped, tag = 'scoped memory for tpu_custom_call.1']
    #allocation5 [shape = 's32[1]{0}', space=sflag, size = 0x4, scoped, tag = 'scoped memory for tpu_custom_call.1']
    #allocation6 [shape = 'u8[1024]{0}', space=vmem, size = 0x400, scoped, tag = 'output window, operand 0, single buffered']
    %6 = vsyncpa [#allocation4], 0
    %7 = vsyncpa [#allocation5], 0
    // Predicated region
    $region2: #{tpu_custom_call.1} parent=1 // pred_check
      _
    $region3: #{tpu_custom_call.1} parent=1 // pred_check_branch
      %9 = sbr.rel (0) target = $region5
    $region4: #{tpu_custom_call.1} parent=1 // pred_region
      %11 = vsyncadd [#allocation4], 0
      %s12 = sshll.u32 %s0, 4
      %s13 = int_to_ptr.hbm [resolvable:$true] %s12
      %s14 = sshll.u32 [#allocation3], 4
      %s15 = int_to_ptr.vmem [resolvable:$true] %s14
      %20 = dma.hbm_to_vmem [thread:$0]  %s13, 256, %s15, [#allocation4], 128, 128, 8
    $region5: #{tpu_custom_call.1} parent=1 // pred_fallthru
      _
    // Predicated region
    $region6: #{tpu_custom_call.1} parent=1 // pred_check
      _
    $region7: #{tpu_custom_call.1} parent=1 // pred_check_branch
      %22 = sbr.rel (0) target = $region9
    $region8: #{tpu_custom_call.1} parent=1 // pred_region
      %24 = dma.done [#allocation4], 256
    $region9: #{tpu_custom_call.1} parent=1 // pred_fallthru
      _
    %p25 = scmp.eq.s32.totalorder 0, 0
    // Predicated region
    $region10: #{tpu_custom_call.1} parent=1 // pred_check
      %p26 = pneg %p25
    $region11: #{tpu_custom_call.1} parent=1 // pred_check_branch
      %28 = sbr.rel (%p26) target = $region13
    $region12: #{tpu_custom_call.1} parent=1 // pred_region
      %vm29 = vcmask 25600
      %30 = vst.msk [vmem:[#allocation2] sm:$0x3] %vm29, 0.0
    $region13: #{tpu_custom_call.1} parent=1 // pred_fallthru
      _
    %v31 = vld [vmem:[#allocation3] sm:$0xff]
    %v32 = vld [vmem:[#allocation3 + $0x8] sm:$0xff]
    %v33 = vld [vmem:[#allocation2] sm:$0x3]
    %36 = vst [vmem:[#allocation1] ss:$2 sm:$0xff] %v31
    %v37 = vld.sshfl [vmem:[#allocation1] sm:$0xff pattern:$0x75316420]
    %v38 = vld.sshfl [vmem:[#allocation1 + $0x8] sm:$0xff pattern:$0x75316420]
    %s39 = scalar_lea.vmem [#allocation1], 16
    %40 = vst [vmem:[%s39] ss:$2 sm:$0xff] %v32
    %v41 = vld.sshfl [vmem:[#allocation1 + $0x10] sm:$0xff pattern:$0x75316420]
    %v42 = vld.sshfl [vmem:[#allocation1 + $0x18] sm:$0xff pattern:$0x75316420]
    %vm47 = vcmask 1043456
    %v48 = vsel %vm47, %v37, 0.0
    %v49 = vsel %vm47, %v38, 0.0
    %v50 = vadd.f32 %v48, %v49
    %51 = vadd.xlane.f32.xlu0 %v50
    %v52 = vpop.xlane.xlu0 %51
    %v53 = vsel %vm47, %v41, 0.0
    %v54 = vsel %vm47, %v42, 0.0
    %v55 = vadd.f32 %v53, %v54
    %56 = vadd.xlane.f32.xlu0 %v55
    %v57 = vpop.xlane.xlu0 %56
    %v60 = vlaneseq
    %v61 = vand.u32 %v60, 127
    %v62 = vperm.slane %v52, %v61
    %v63 = vperm.slane %v57, %v61
    %vm64 = vcmask 1041409
    %v65 = vsel %vm64, %v63, %v62
    %v67 = vadd.f32 %v33, %v65
    %vm68 = vcmask 25600
    %69 = vst.msk [vmem:[#allocation2] sm:$0x3] %vm68, %v67
    // Predicated region
    $region14: #{tpu_custom_call.1} parent=1 // pred_check
      %p70 = pneg %p25
    $region15: #{tpu_custom_call.1} parent=1 // pred_check_branch
      %72 = sbr.rel (%p70) target = $region17
    $region16: #{tpu_custom_call.1} parent=1 // pred_region
      %v73 = vld [vmem:[#allocation2] sm:$0x3]
      %v74 = vmul.f32 %v73, 0.00390625
      %75 = vst.msk [vmem:[#allocation6] sm:$0x3] %vm68, %v74
    $region17: #{tpu_custom_call.1} parent=1 // pred_fallthru
      _
    // Predicated region
    $region18: #{tpu_custom_call.1} parent=1 // pred_check
      _
    $region19: #{tpu_custom_call.1} parent=1 // pred_check_branch
      %77 = sbr.rel (0) target = $region21
    $region20: #{tpu_custom_call.1} parent=1 // pred_region
      %79 = vsyncadd [#allocation5], 0
      %s81 = sshll.u32 [#allocation6], 4
      %s82 = int_to_ptr.vmem [resolvable:$true] %s81
      %s83 = sshll.u32 %s1, 4
      %s84 = int_to_ptr.hbm [resolvable:$true] %s83
      %86 = dma.vmem_to_hbm [thread:$0]  %s82, 32, %s84, [#allocation5]
    $region21: #{tpu_custom_call.1} parent=1 // pred_fallthru
      _
    // Predicated region
    $region22: #{tpu_custom_call.1} parent=1 // pred_check
      _
    $region23: #{tpu_custom_call.1} parent=1 // pred_check_branch
      %88 = sbr.rel (0) target = $region25
    $region24: #{tpu_custom_call.1} parent=1 // pred_region
      %90 = dma.done [#allocation5], 32
    $region25: #{tpu_custom_call.1} parent=1 // pred_fallthru
      _
    %91 = vsyncpa [#allocation4], 1
    %92 = vsyncpa [#allocation5], 1

</llo_original>
